<compile_context>
chip_gen: v5e
topology: v5e:2x2
jax: 0.10.0
libtpu: 0.0.40
codegen_flags: <defaults>
</compile_context>

<pallas_src>
import jax
import jax.numpy as jnp
from jax.experimental import pallas as pl
from jax.experimental.pallas import tpu as pltpu


def _round_up(x, m):
    return ((x + m - 1) // m) * m


def image_model_kernel(x_ref, wc_ref, bc_ref, o_ref):
    """Fused conv(im2col matmul) + bias + ReLU + spatial sum-pool accumulator.

    x_ref : (B_TILE, ROW_BLK, K)   bf16  im2col rows for this (batch, row) block
    wc_ref: (K, CMID_PAD)          bf16  conv weights (lane-padded Cmid)
    bc_ref: (1, CMID_PAD)          f32   conv bias
    o_ref : (B_TILE, CMID_PAD)     f32   per-image SUM of ReLU(conv) over H*W
                                         (wrapper folds 1/(H*W) into fc weight)
    """
    r = pl.program_id(1)

    @pl.when(r == 0)
    def _init():
        o_ref[...] = jnp.zeros_like(o_ref)

    b_tile, row_blk, k = x_ref.shape
    cmid = o_ref.shape[-1]

    # One lane-dense MXU matmul over every row in the block (K is ragged; no
    # HBM zero-padding of the contraction dim).  row_blk is a multiple of 8
    # (tile picker) so the merge/split reshapes are pure retiles, not copies.
    xb = x_ref[...].reshape(b_tile * row_blk, k)
    act = jnp.dot(xb, wc_ref[...], preferred_element_type=jnp.float32)
    act = jnp.maximum(act + bc_ref[...], 0.0)          # bias + ReLU, f32 VPU

    # Partial spatial sum per image, accumulated into the resident output block.
    o_ref[...] += act.reshape(b_tile, row_blk, cmid).sum(axis=1)


def _pick_batch_tile(n):
    """Images per batch block.  Full batch when small (one grid step on the
    1-TC v5e/v6e instead of serial tiny steps); otherwise a multiple-of-8
    divisor so the pooled-feature output block stays sublane-dense."""
    if n <= 8 or n % 8 != 0:
        return n
    return 8


def _pick_row_block(hw, b_tile, k, cmid_pad, *, rows_target=2048,
                    vmem_budget=24 * 1024 * 1024):
    """Spatial rows per grid step.  Aim for ~rows_target matmul rows per step
    (amortize ~0.35us/step overhead, deep MXU M), bounded by a conservative
    per-step VMEM estimate.  Candidates are multiples of 8 dividing H*W
    (pure-retile reshapes); row_blk == hw is the legal fallback."""
    cands = sorted({d for d in range(8, hw + 1, 8) if hw % d == 0} | {hw})

    def step_bytes(rb):
        lhs = 2 * b_tile * rb * k * 2              # double-buffered bf16 LHS
        act = b_tile * rb * cmid_pad * 4           # live f32 conv activation
        wts = 2 * (k * cmid_pad * 2 + cmid_pad * 4)
        out = b_tile * cmid_pad * 4
        return lhs + act + wts + out

    fitting = [rb for rb in cands if step_bytes(rb) <= vmem_budget] or [cands[0]]
    under = [rb for rb in fitting if b_tile * rb <= rows_target]
    return max(under) if under else min(fitting)


def image_model_forward(x_nchw, params, *, rows_target=2048):
    """Forward pass of ImageModel.  x_nchw: (N, Cin, H, W) float32."""
    w_conv = params["w_conv"]      # (3, 3, Cin, Cmid)
    b_conv = params["b_conv"]      # (Cmid,)
    w_fc = params["w_fc"]          # (Cmid, class_n)
    b_fc = params["b_fc"]          # (class_n,)

    N, Cin, H, W = x_nchw.shape
    Cmid = w_conv.shape[-1]
    HW = H * W
    K = 9 * Cin
    CMID_PAD = _round_up(Cmid, 128)

    # --- wrapper-side layout plumbing (NCHW -> im2col, NO K zero-padding) ---
    x = jnp.transpose(x_nchw, (0, 2, 3, 1))                     # NHWC
    x_pad = jnp.pad(x, ((0, 0), (1, 1), (1, 1), (0, 0)))        # "same" 3x3
    taps = [x_pad[:, kh:kh + H, kw:kw + W, :]
            for kh in range(3) for kw in range(3)]              # 9 x (N,H,W,Cin)
    patches = jnp.stack(taps, axis=3)                           # (N,H,W,9,Cin)
    lhs = patches.reshape(N, HW, K).astype(jnp.bfloat16)        # (N, HW, K)

    wc = w_conv.reshape(K, Cmid)                                # tap-major, ch-minor
    wc = jnp.pad(wc, ((0, 0), (0, CMID_PAD - Cmid))).astype(jnp.bfloat16)
    bc = jnp.pad(b_conv, (0, CMID_PAD - Cmid)).reshape(1, CMID_PAD)

    # --- grid: batch blocks ("parallel") x spatial row blocks ("arbitrary") --
    b_tile = _pick_batch_tile(N)
    row_blk = _pick_row_block(HW, b_tile, K, CMID_PAD, rows_target=rows_target)
    grid = (N // b_tile, HW // row_blk)

    pooled_sum = pl.pallas_call(
        image_model_kernel,
        out_shape=jax.ShapeDtypeStruct((N, CMID_PAD), jnp.float32),
        grid_spec=pltpu.PrefetchScalarGridSpec(
            num_scalar_prefetch=0,
            grid=grid,
            in_specs=[
                pl.BlockSpec((b_tile, row_blk, K), lambda b, r: (b, r, 0)),
                pl.BlockSpec((K, CMID_PAD), lambda b, r: (0, 0)),
                pl.BlockSpec((1, CMID_PAD), lambda b, r: (0, 0)),
            ],
            out_specs=pl.BlockSpec((b_tile, CMID_PAD), lambda b, r: (b, 0)),
        ),
        compiler_params=pltpu.CompilerParams(
            dimension_semantics=("parallel", "arbitrary"),
            # Tile picker budgets <= 24 MiB/step; 32 MiB fits every generation
            # (>= v5e default 16 MiB, <= v7x physical 64 MiB).
            vmem_limit_bytes=32 * 1024 * 1024),
    )(lhs, wc, bc)

    # Replaced classifier head, once per batch in plain XLA (tiny matmul).
    # Pooling's 1/(H*W) is folded into the weight (exact: fc is linear).
    pooled = pooled_sum[:, :Cmid]
    return pooled @ (w_fc * (1.0 / HW)) + b_fc


def reference_forward(x_nchw, params):
    """Pure-JAX reference, mirroring the kernel's precision choices:
    conv operands are bf16-rounded (f32 accumulate), everything else f32."""
    x = x_nchw.astype(jnp.bfloat16).astype(jnp.float32)
    w_conv = params["w_conv"].astype(jnp.bfloat16).astype(jnp.float32)
    y = jax.lax.conv_general_dilated(
        x, jnp.transpose(w_conv, (3, 2, 0, 1)),
        window_strides=(1, 1), padding="SAME",
        dimension_numbers=("NCHW", "OIHW", "NCHW"))
    y = y + params["b_conv"][None, :, None, None]
    y = jnp.maximum(y, 0.0)
    pooled = jnp.mean(y, axis=(2, 3))
    return pooled @ params["w_fc"] + params["b_fc"]


def init_params(key, cin, cmid, class_n):
    k1, k2, k3, k4 = jax.random.split(key, 4)
    return {
        "w_conv": jax.random.normal(k1, (3, 3, cin, cmid), jnp.float32) * 0.1,
        "b_conv": jax.random.normal(k2, (cmid,), jnp.float32) * 0.01,
        "w_fc": jax.random.normal(k3, (cmid, class_n), jnp.float32) * 0.1,
        "b_fc": jax.random.normal(k4, (class_n,), jnp.float32) * 0.01,
    }


if __name__ == "__main__":
    # Small shapes consistent with an image classifier forward pass.
    N, Cin, H, W = 2, 4, 16, 16
    num_features = 32       # encoder.num_features (synthetic stem)
    class_n = 10            # the replaced Linear head's out_features

    key = jax.random.PRNGKey(0)
    kx, kp = jax.random.split(key)
    x = jax.random.normal(kx, (N, Cin, H, W), jnp.float32)
    params = init_params(kp, Cin, num_features, class_n)

    out = image_model_forward(x, params)
    out = jax.block_until_ready(out)
    ref = reference_forward(x, params)
    assert out.shape == (N, class_n)
    assert jnp.allclose(out, ref, atol=1e-3, rtol=1e-3), "mismatch vs reference"

    # Exercise the multi-block accumulator path (2 batch blocks x 8 spatial
    # row blocks) by forcing a small rows-per-step target.
    N2, Cin2, H2, W2, Cmid2, cls2 = 16, 3, 8, 8, 24, 7
    kx2, kp2 = jax.random.split(jax.random.PRNGKey(1))
    x2 = jax.random.normal(kx2, (N2, Cin2, H2, W2), jnp.float32)
    params2 = init_params(kp2, Cin2, Cmid2, cls2)
    out2 = jax.block_until_ready(
        image_model_forward(x2, params2, rows_target=64))
    ref2 = reference_forward(x2, params2)
    assert out2.shape == (N2, cls2)
    assert jnp.allclose(out2, ref2, atol=1e-3, rtol=1e-3), "mismatch (multi-block)"

    print("KERNEL_OK")
</pallas_src>

<mosaic_0001>
module attributes {stable_mosaic.version = 11 : i64} {
  func.func @image_model_kernel(%arg0: i32, %arg1: i32, %arg2: memref<2x256x36xbf16, #tpu.memory_space<vmem>>, %arg3: memref<36x128xbf16, #tpu.memory_space<vmem>>, %arg4: memref<1x128xf32, #tpu.memory_space<vmem>>, %arg5: memref<2x128xf32, #tpu.memory_space<vmem>>) attributes {dimension_semantics = [#tpu.dimension_semantics<parallel>, #tpu.dimension_semantics<arbitrary>], iteration_bounds = array<i64: 1, 1>, scalar_prefetch = 0 : i64, scratch_operands = 0 : i64, tpu.core_type = #tpu.core_type<tc>, window_params = [{transform_indices = @transform_0, window_bounds = array<i64: 2, 256, 36>}, {pipeline_mode = #tpu.pipeline_mode<synchronous>, transform_indices = @transform_1, window_bounds = array<i64: 36, 128>}, {pipeline_mode = #tpu.pipeline_mode<synchronous>, transform_indices = @transform_2, window_bounds = array<i64: 1, 128>}, {transform_indices = @transform_3, window_bounds = array<i64: 2, 128>}]} {
    %c0_i32 = arith.constant 0 : i32
    %0 = arith.cmpi eq, %arg1, %c0_i32 : i32
    %1 = arith.extui %0 : i1 to i32
    %c0_i32_0 = arith.constant 0 : i32
    %2 = arith.cmpi ne, %1, %c0_i32_0 : i32
    scf.if %2 {
      %cst_13 = arith.constant 0.000000e+00 : f32
      %17 = vector.broadcast %cst_13 : f32 to vector<2x128xf32>
      %c0_14 = arith.constant 0 : index
      %c0_15 = arith.constant 0 : index
      %18 = vector.load %arg5[%c0_14, %c0_15] : memref<2x128xf32, #tpu.memory_space<vmem>>, vector<2x128xf32>
      tpu.vector_store %arg5[%c0_14, %c0_15], %17 {strides = array<i32>} : memref<2x128xf32, #tpu.memory_space<vmem>>, vector<2x128xf32>,
    } else {
    }
    %c0 = arith.constant 0 : index
    %c0_1 = arith.constant 0 : index
    %c0_2 = arith.constant 0 : index
    %3 = vector.load %arg2[%c0, %c0_1, %c0_2] : memref<2x256x36xbf16, #tpu.memory_space<vmem>>, vector<2x256x36xbf16>
    %4 = vector.shape_cast %3 : vector<2x256x36xbf16> to vector<512x36xbf16>
    %c0_3 = arith.constant 0 : index
    %c0_4 = arith.constant 0 : index
    %5 = vector.load %arg3[%c0_3, %c0_4] : memref<36x128xbf16, #tpu.memory_space<vmem>>, vector<36x128xbf16>
    %cst = arith.constant dense<0.000000e+00> : vector<512x128xf32>
    %6 = tpu.matmul %4, %5, %cst {dimension_numbers = #tpu.dot_dimension_numbers<[1], [0], [0], [1], [0, 0, 1, 1], [], []>} : vector<512x36xbf16>, vector<36x128xbf16>, vector<512x128xf32> -> vector<512x128xf32>
    %c0_5 = arith.constant 0 : index
    %c0_6 = arith.constant 0 : index
    %7 = vector.load %arg4[%c0_5, %c0_6] : memref<1x128xf32, #tpu.memory_space<vmem>>, vector<1x128xf32>
    %8 = vector.broadcast %7 : vector<1x128xf32> to vector<512x128xf32>
    %9 = arith.addf %6, %8 : vector<512x128xf32>
    %cst_7 = arith.constant 0.000000e+00 : f32
    %10 = vector.broadcast %cst_7 : f32 to vector<512x128xf32>
    %11 = arith.maximumf %9, %10 : vector<512x128xf32>
    %c0_8 = arith.constant 0 : index
    %c0_9 = arith.constant 0 : index
    %12 = vector.load %arg5[%c0_8, %c0_9] : memref<2x128xf32, #tpu.memory_space<vmem>>, vector<2x128xf32>
    %13 = vector.shape_cast %11 : vector<512x128xf32> to vector<2x256x128xf32>
    %cst_10 = arith.constant dense<0.000000e+00> : vector<2x128xf32>
    %14 = vector.multi_reduction <add>, %13, %cst_10 [1] : vector<2x256x128xf32> to vector<2x128xf32>
    %15 = arith.addf %12, %14 : vector<2x128xf32>
    %c0_11 = arith.constant 0 : index
    %c0_12 = arith.constant 0 : index
    %16 = vector.load %arg5[%c0_11, %c0_12] : memref<2x128xf32, #tpu.memory_space<vmem>>, vector<2x128xf32>
    tpu.vector_store %arg5[%c0_11, %c0_12], %15 {strides = array<i32>} : memref<2x128xf32, #tpu.memory_space<vmem>>, vector<2x128xf32>,
    return
  }
  func.func @transform_0(%arg0: i32, %arg1: i32) -> (i32, i32, i32) {
    %c0_i32 = arith.constant 0 : i32
    %c0_i32_0 = arith.constant 0 : i32
    return %arg0, %arg1, %c0_i32 : i32, i32, i32
  }
  func.func @transform_1(%arg0: i32, %arg1: i32) -> (i32, i32) {
    %c0_i32 = arith.constant 0 : i32
    %c0_i32_0 = arith.constant 0 : i32
    %c0_i32_1 = arith.constant 0 : i32
    return %c0_i32, %c0_i32_0 : i32, i32
  }
  func.func @transform_2(%arg0: i32, %arg1: i32) -> (i32, i32) {
    %c0_i32 = arith.constant 0 : i32
    %c0_i32_0 = arith.constant 0 : i32
    %c0_i32_1 = arith.constant 0 : i32
    return %c0_i32, %c0_i32_0 : i32, i32
  }
  func.func @transform_3(%arg0: i32, %arg1: i32) -> (i32, i32) {
    %c0_i32 = arith.constant 0 : i32
    %c0_i32_0 = arith.constant 0 : i32
    return %arg0, %c0_i32 : i32, i32
  }
}

</mosaic_0001>

<llo_original>
// kernel: tpu_custom_call.1
$region0: #{tpu_custom_call.1}
  #allocation0 [shape = 'u32[]', space=smem, size = 0x4, offset = 0x4, fixed_abs, tag = 'smem constant byte address 0x4 - core index']
  #allocation1 [shape = 'u32[72,128]{1,0:T(1,128)}', space=vmem, size = 0x9000, scoped, tag = 'internal scratch']
  %s0 = inlined_call_operand.vmem [shape: bf16[2,256,36], index: 0, kind: input, shape index: {}]
  %s1 = inlined_call_operand.vmem [shape: bf16[36,128], index: 1, kind: input, shape index: {}]
  %s2 = inlined_call_operand.vmem [shape: f32[1,128], index: 2, kind: input, shape index: {}]
  %s3 = inlined_call_operand.hbm [shape: f32[2,128], index: 3, kind: output, shape index: {}]
  %s4 = sld [smem:[#allocation0]]
  $region26: #{tpu_custom_call.1} parent=0
    _
  %s6 = ssub.s32 1, %s4
  %s7 = scalar_select 0, %s6, %s4
  $region1: #{tpu_custom_call.1} parent=0
    #allocation2 [shape = 'u8[1024]{0}', space=vmem, size = 0x400, scoped, tag = 'output window, operand 0, single buffered']
    #allocation3 [shape = 's32[1]{0}', space=sflag, size = 0x4, scoped, tag = 'scoped memory for tpu_custom_call.1']
    %8 = vsyncpa [#allocation3], 0
    // Predicated region
    $region2: #{tpu_custom_call.1} parent=1 // pred_check
      _
    $region3: #{tpu_custom_call.1} parent=1 // pred_check_branch
      %10 = sbr.rel (0) target = $region5
    $region4: #{tpu_custom_call.1} parent=1 // pred_region
      _
    $region5: #{tpu_custom_call.1} parent=1 // pred_fallthru
      _
    // Predicated region
    $region6: #{tpu_custom_call.1} parent=1 // pred_check
      _
    $region7: #{tpu_custom_call.1} parent=1 // pred_check_branch
      %12 = sbr.rel (0) target = $region9
    $region8: #{tpu_custom_call.1} parent=1 // pred_region
      _
    $region9: #{tpu_custom_call.1} parent=1 // pred_fallthru
      _
    // Predicated region
    $region10: #{tpu_custom_call.1} parent=1 // pred_check
      _
    $region11: #{tpu_custom_call.1} parent=1 // pred_check_branch
      %14 = sbr.rel (0) target = $region13
    $region12: #{tpu_custom_call.1} parent=1 // pred_region
      _
    $region13: #{tpu_custom_call.1} parent=1 // pred_fallthru
      _
    %p16 = scmp.eq.s32.totalorder 0, 0
    // Predicated region
    $region14: #{tpu_custom_call.1} parent=1 // pred_check
      %p17 = pneg %p16
    $region15: #{tpu_custom_call.1} parent=1 // pred_check_branch
      %19 = sbr.rel (%p17) target = $region17
    $region16: #{tpu_custom_call.1} parent=1 // pred_region
      %20 = vst [vmem:[#allocation2] sm:$0x3] 0.0
    $region17: #{tpu_custom_call.1} parent=1 // pred_fallthru
      _
    %v21 = vld [vmem:[%s0] sm:$0xf]
    %v22 = vld [vmem:[%s0 + $0x4] sm:$0xf]
    %v23 = vld [vmem:[%s0 + $0x8] sm:$0xf]
    %v24 = vld [vmem:[%s0 + $0xc] sm:$0xf]
    %v25 = vld [vmem:[%s0 + $0x10] sm:$0xf]
    %v26 = vld [vmem:[%s0 + $0x14] sm:$0xf]
    %v27 = vld [vmem:[%s0 + $0x18] sm:$0xf]
    %v28 = vld [vmem:[%s0 + $0x1c] sm:$0xf]
    %v29 = vld [vmem:[%s0 + $0x20] sm:$0xf]
    %v30 = vld [vmem:[%s0 + $0x24] sm:$0xf]
    %v31 = vld [vmem:[%s0 + $0x28] sm:$0xf]
    %v32 = vld [vmem:[%s0 + $0x2c] sm:$0xf]
    %v33 = vld [vmem:[%s0 + $0x30] sm:$0xf]
    %v34 = vld [vmem:[%s0 + $0x34] sm:$0xf]
    %v35 = vld [vmem:[%s0 + $0x38] sm:$0xf]
    %v36 = vld [vmem:[%s0 + $0x3c] sm:$0xf]
    %v37 = vld [vmem:[%s0 + $0x40] sm:$0xf]
    %v38 = vld [vmem:[%s0 + $0x44] sm:$0xf]
    %v39 = vld [vmem:[%s0 + $0x48] sm:$0xf]
    %v40 = vld [vmem:[%s0 + $0x4c] sm:$0xf]
    %v41 = vld [vmem:[%s0 + $0x50] sm:$0xf]
    %v42 = vld [vmem:[%s0 + $0x54] sm:$0xf]
    %v43 = vld [vmem:[%s0 + $0x58] sm:$0xf]
    %v44 = vld [vmem:[%s0 + $0x5c] sm:$0xf]
    %v45 = vld [vmem:[%s0 + $0x60] sm:$0xf]
    %v46 = vld [vmem:[%s0 + $0x64] sm:$0xf]
    %v47 = vld [vmem:[%s0 + $0x68] sm:$0xf]
    %v48 = vld [vmem:[%s0 + $0x6c] sm:$0xf]
    %v49 = vld [vmem:[%s0 + $0x70] sm:$0xf]
    %v50 = vld [vmem:[%s0 + $0x74] sm:$0xf]
    %v51 = vld [vmem:[%s0 + $0x78] sm:$0xf]
    %v52 = vld [vmem:[%s0 + $0x7c] sm:$0xf]
    %v53 = vld [vmem:[%s0 + $0x80] sm:$0xf]
    %v54 = vld [vmem:[%s0 + $0x84] sm:$0xf]
    %v55 = vld [vmem:[%s0 + $0x88] sm:$0xf]
    %v56 = vld [vmem:[%s0 + $0x8c] sm:$0xf]
    %v57 = vld [vmem:[%s0 + $0x90] sm:$0xf]
    %v58 = vld [vmem:[%s0 + $0x94] sm:$0xf]
    %v59 = vld [vmem:[%s0 + $0x98] sm:$0xf]
    %v60 = vld [vmem:[%s0 + $0x9c] sm:$0xf]
    %v61 = vld [vmem:[%s0 + $0xa0] sm:$0xf]
    %v62 = vld [vmem:[%s0 + $0xa4] sm:$0xf]
    %v63 = vld [vmem:[%s0 + $0xa8] sm:$0xf]
    %v64 = vld [vmem:[%s0 + $0xac] sm:$0xf]
    %v65 = vld [vmem:[%s0 + $0xb0] sm:$0xf]
    %v66 = vld [vmem:[%s0 + $0xb4] sm:$0xf]
    %v67 = vld [vmem:[%s0 + $0xb8] sm:$0xf]
    %v68 = vld [vmem:[%s0 + $0xbc] sm:$0xf]
    %v69 = vld [vmem:[%s0 + $0xc0] sm:$0xf]
    %v70 = vld [vmem:[%s0 + $0xc4] sm:$0xf]
    %v71 = vld [vmem:[%s0 + $0xc8] sm:$0xf]
    %v72 = vld [vmem:[%s0 + $0xcc] sm:$0xf]
    %v73 = vld [vmem:[%s0 + $0xd0] sm:$0xf]
    %v74 = vld [vmem:[%s0 + $0xd4] sm:$0xf]
    %v75 = vld [vmem:[%s0 + $0xd8] sm:$0xf]
    %v76 = vld [vmem:[%s0 + $0xdc] sm:$0xf]
    %v77 = vld [vmem:[%s0 + $0xe0] sm:$0xf]
    %v78 = vld [vmem:[%s0 + $0xe4] sm:$0xf]
    %v79 = vld [vmem:[%s0 + $0xe8] sm:$0xf]
    %v80 = vld [vmem:[%s0 + $0xec] sm:$0xf]
    %v81 = vld [vmem:[%s0 + $0xf0] sm:$0xf]
    %v82 = vld [vmem:[%s0 + $0xf4] sm:$0xf]
    %v83 = vld [vmem:[%s0 + $0xf8] sm:$0xf]
    %v84 = vld [vmem:[%s0 + $0xfc] sm:$0xf]
    %v85 = vld [vmem:[%s1] sm:$0xf]
    %v86 = vld [vmem:[%s1 + $0x4] sm:$0xf]
    %v87 = vld [vmem:[%s1 + $0x8] sm:$0xf]
    %v88 = vld [vmem:[%s1 + $0xc] sm:$0xf]
    %v89 = vld [vmem:[%s1 + $0x10] sm:$0x3]
    %v90 = vld [vmem:[%s2] sm:$0x1]
    %v92 = vperm.slane %v90, 0
    %v158 = vunpack.c.l.b16 %v21
    %v159 = vunpack.c.l.b16 %v22
    %v160 = vunpack.c.l.b16 %v23
    %v161 = vunpack.c.l.b16 %v24
    %v162 = vunpack.c.l.b16 %v25
    %v163 = vunpack.c.l.b16 %v26
    %v164 = vunpack.c.l.b16 %v27
    %v165 = vunpack.c.l.b16 %v28
    %v166 = vunpack.c.l.b16 %v29
    %v167 = vunpack.c.l.b16 %v30
    %v168 = vunpack.c.l.b16 %v31
    %v169 = vunpack.c.l.b16 %v32
    %v170 = vunpack.c.l.b16 %v33
    %v171 = vunpack.c.l.b16 %v34
    %v172 = vunpack.c.l.b16 %v35
    %v173 = vunpack.c.l.b16 %v36
    %v174 = vunpack.c.l.b16 %v37
    %v175 = vunpack.c.l.b16 %v38
    %v176 = vunpack.c.l.b16 %v39
    %v177 = vunpack.c.l.b16 %v40
    %v178 = vunpack.c.l.b16 %v41
    %v179 = vunpack.c.l.b16 %v42
    %v180 = vunpack.c.l.b16 %v43
    %v181 = vunpack.c.l.b16 %v44
    %v182 = vunpack.c.l.b16 %v45
    %v183 = vunpack.c.l.b16 %v46
    %v184 = vunpack.c.l.b16 %v47
    %v185 = vunpack.c.l.b16 %v48
    %v186 = vunpack.c.l.b16 %v49
    %v187 = vunpack.c.l.b16 %v50
    %v188 = vunpack.c.l.b16 %v51
    %v189 = vunpack.c.l.b16 %v52
    %v190 = vunpack.c.l.b16 %v53
    %v191 = vunpack.c.l.b16 %v54
    %v192 = vunpack.c.l.b16 %v55
    %v193 = vunpack.c.l.b16 %v56
    %v194 = vunpack.c.l.b16 %v57
    %v195 = vunpack.c.l.b16 %v58
    %v196 = vunpack.c.l.b16 %v59
    %v197 = vunpack.c.l.b16 %v60
    %v198 = vunpack.c.l.b16 %v61
    %v199 = vunpack.c.l.b16 %v62
    %v200 = vunpack.c.l.b16 %v63
    %v201 = vunpack.c.l.b16 %v64
    %v202 = vunpack.c.l.b16 %v65
    %v203 = vunpack.c.l.b16 %v66
    %v204 = vunpack.c.l.b16 %v67
    %v205 = vunpack.c.l.b16 %v68
    %v206 = vunpack.c.l.b16 %v69
    %v207 = vunpack.c.l.b16 %v70
    %v208 = vunpack.c.l.b16 %v71
    %v209 = vunpack.c.l.b16 %v72
    %v210 = vunpack.c.l.b16 %v73
    %v211 = vunpack.c.l.b16 %v74
    %v212 = vunpack.c.l.b16 %v75
    %v213 = vunpack.c.l.b16 %v76
    %v214 = vunpack.c.l.b16 %v77
    %v215 = vunpack.c.l.b16 %v78
    %v216 = vunpack.c.l.b16 %v79
    %v217 = vunpack.c.l.b16 %v80
    %v218 = vunpack.c.l.b16 %v81
    %v219 = vunpack.c.l.b16 %v82
    %v220 = vunpack.c.l.b16 %v83
    %v221 = vunpack.c.l.b16 %v84
    %v222 = vpack.c.b16 %v159, %v158
    %v223 = vpack.c.b16 %v161, %v160
    %v224 = vpack.c.b16 %v163, %v162
    %v225 = vpack.c.b16 %v165, %v164
    %v226 = vpack.c.b16 %v167, %v166
    %v227 = vpack.c.b16 %v169, %v168
    %v228 = vpack.c.b16 %v171, %v170
    %v229 = vpack.c.b16 %v173, %v172
    %v230 = vpack.c.b16 %v175, %v174
    %v231 = vpack.c.b16 %v177, %v176
    %v232 = vpack.c.b16 %v179, %v178
    %v233 = vpack.c.b16 %v181, %v180
    %v234 = vpack.c.b16 %v183, %v182
    %v235 = vpack.c.b16 %v185, %v184
    %v236 = vpack.c.b16 %v187, %v186
    %v237 = vpack.c.b16 %v189, %v188
    %v238 = vpack.c.b16 %v191, %v190
    %v239 = vpack.c.b16 %v193, %v192
    %v240 = vpack.c.b16 %v195, %v194
    %v241 = vpack.c.b16 %v197, %v196
    %v242 = vpack.c.b16 %v199, %v198
    %v243 = vpack.c.b16 %v201, %v200
    %v244 = vpack.c.b16 %v203, %v202
    %v245 = vpack.c.b16 %v205, %v204
    %v246 = vpack.c.b16 %v207, %v206
    %v247 = vpack.c.b16 %v209, %v208
    %v248 = vpack.c.b16 %v211, %v210
    %v249 = vpack.c.b16 %v213, %v212
    %v250 = vpack.c.b16 %v215, %v214
    %v251 = vpack.c.b16 %v217, %v216
    %v252 = vpack.c.b16 %v219, %v218
    %v253 = vpack.c.b16 %v221, %v220
    %v259 = vunpack.c.l.b16 %v85
    %v260 = vunpack.c.l.b16 %v86
    %v261 = vunpack.c.l.b16 %v87
    %v262 = vunpack.c.l.b16 %v88
    %v263 = vunpack.c.l.b16 %v89
    %v264 = vpack.c.b16 %v260, %v259
    %v265 = vpack.c.b16 %v262, %v261
    %v266 = vpack.c.b16 %v263, %v263
    %vm269 = vcmask 293888
    %v271 = vsel %vm269, %v222, 0
    %v274 = vsel %vm269, %v223, 0
    %v277 = vsel %vm269, %v224, 0
    %v280 = vsel %vm269, %v225, 0
    %v283 = vsel %vm269, %v226, 0
    %v286 = vsel %vm269, %v227, 0
    %v289 = vsel %vm269, %v228, 0
    %v292 = vsel %vm269, %v229, 0
    %v295 = vsel %vm269, %v230, 0
    %v298 = vsel %vm269, %v231, 0
    %v301 = vsel %vm269, %v232, 0
    %v304 = vsel %vm269, %v233, 0
    %v307 = vsel %vm269, %v234, 0
    %v310 = vsel %vm269, %v235, 0
    %v313 = vsel %vm269, %v236, 0
    %v316 = vsel %vm269, %v237, 0
    %v319 = vsel %vm269, %v238, 0
    %v322 = vsel %vm269, %v239, 0
    %v325 = vsel %vm269, %v240, 0
    %v328 = vsel %vm269, %v241, 0
    %v331 = vsel %vm269, %v242, 0
    %v334 = vsel %vm269, %v243, 0
    %v337 = vsel %vm269, %v244, 0
    %v340 = vsel %vm269, %v245, 0
    %v343 = vsel %vm269, %v246, 0
    %v346 = vsel %vm269, %v247, 0
    %v349 = vsel %vm269, %v248, 0
    %v352 = vsel %vm269, %v249, 0
    %v355 = vsel %vm269, %v250, 0
    %v358 = vsel %vm269, %v251, 0
    %v361 = vsel %vm269, %v252, 0
    %v364 = vsel %vm269, %v253, 0
    %vm366 = vcmask 1041408
    %v368 = vsel %vm366, %v266, 0
    %370 = vmatpush.bf16.msra.mxu0 0
    %371 = vmatpush.bf16.msra.mxu0 0
    %372 = vmatpush.bf16.msra.mxu0 0
    %373 = vmatpush.bf16.msra.mxu0 0
    %374 = vmatpush.bf16.msra.mxu0 0
    %375 = vmatpush.bf16.msra.mxu0 %v368
    %376 = vmatpush.bf16.msra.mxu0 %v265
    %377 = vmatpush.bf16.msra.mxu0 %v264
    %378 = vmatmul.bf16.gmra.mxu0 %v271
    %v379 = vpop.f32.mrf.mxu0
    %v380 = vadd.f32 %v92, %v379
    %v381 = vpop.f32.mrf.mxu0
    %v382 = vadd.f32 %v92, %v381
    %383 = vmatmul.bf16.gmra.mxu0 %v274
    %v384 = vpop.f32.mrf.mxu0
    %v385 = vadd.f32 %v92, %v384
    %v386 = vpop.f32.mrf.mxu0
    %v387 = vadd.f32 %v92, %v386
    %388 = vmatmul.bf16.gmra.mxu0 %v277
    %v389 = vpop.f32.mrf.mxu0
    %v390 = vadd.f32 %v92, %v389
    %v391 = vpop.f32.mrf.mxu0
    %v392 = vadd.f32 %v92, %v391
    %393 = vmatmul.bf16.gmra.mxu0 %v280
    %v394 = vpop.f32.mrf.mxu0
    %v395 = vadd.f32 %v92, %v394
    %v396 = vpop.f32.mrf.mxu0
    %v397 = vadd.f32 %v92, %v396
    %398 = vmatmul.bf16.gmra.mxu0 %v283
    %v399 = vpop.f32.mrf.mxu0
    %v400 = vadd.f32 %v92, %v399
    %v401 = vpop.f32.mrf.mxu0
    %v402 = vadd.f32 %v92, %v401
    %403 = vmatmul.bf16.gmra.mxu0 %v286
    %v404 = vpop.f32.mrf.mxu0
    %v405 = vadd.f32 %v92, %v404
    %v406 = vpop.f32.mrf.mxu0
    %v407 = vadd.f32 %v92, %v406
    %408 = vmatmul.bf16.gmra.mxu0 %v289
    %v409 = vpop.f32.mrf.mxu0
    %v410 = vadd.f32 %v92, %v409
    %v411 = vpop.f32.mrf.mxu0
    %v412 = vadd.f32 %v92, %v411
    %413 = vmatmul.bf16.gmra.mxu0 %v292
    %v414 = vpop.f32.mrf.mxu0
    %v415 = vadd.f32 %v92, %v414
    %v416 = vpop.f32.mrf.mxu0
    %v417 = vadd.f32 %v92, %v416
    %418 = vmatmul.bf16.gmra.mxu0 %v295
    %v419 = vpop.f32.mrf.mxu0
    %v420 = vadd.f32 %v92, %v419
    %v421 = vpop.f32.mrf.mxu0
    %v422 = vadd.f32 %v92, %v421
    %423 = vmatmul.bf16.gmra.mxu0 %v298
    %v424 = vpop.f32.mrf.mxu0
    %v425 = vadd.f32 %v92, %v424
    %v426 = vpop.f32.mrf.mxu0
    %v427 = vadd.f32 %v92, %v426
    %428 = vmatmul.bf16.gmra.mxu0 %v301
    %v429 = vpop.f32.mrf.mxu0
    %v430 = vadd.f32 %v92, %v429
    %v431 = vpop.f32.mrf.mxu0
    %v432 = vadd.f32 %v92, %v431
    %433 = vmatmul.bf16.gmra.mxu0 %v304
    %v434 = vpop.f32.mrf.mxu0
    %v435 = vadd.f32 %v92, %v434
    %v436 = vpop.f32.mrf.mxu0
    %v437 = vadd.f32 %v92, %v436
    %438 = vmatmul.bf16.gmra.mxu0 %v307
    %v439 = vpop.f32.mrf.mxu0
    %v440 = vadd.f32 %v92, %v439
    %v441 = vpop.f32.mrf.mxu0
    %v442 = vadd.f32 %v92, %v441
    %443 = vmatmul.bf16.gmra.mxu0 %v310
    %v444 = vpop.f32.mrf.mxu0
    %v445 = vadd.f32 %v92, %v444
    %v446 = vpop.f32.mrf.mxu0
    %v447 = vadd.f32 %v92, %v446
    %448 = vmatmul.bf16.gmra.mxu0 %v313
    %v449 = vpop.f32.mrf.mxu0
    %v450 = vadd.f32 %v92, %v449
    %v451 = vpop.f32.mrf.mxu0
    %v452 = vadd.f32 %v92, %v451
    %453 = vmatmul.bf16.gmra.mxu0 %v316
    %v454 = vpop.f32.mrf.mxu0
    %v455 = vadd.f32 %v92, %v454
    %v456 = vpop.f32.mrf.mxu0
    %v457 = vadd.f32 %v92, %v456
    %458 = vmatmul.bf16.gmra.mxu0 %v319
    %v459 = vpop.f32.mrf.mxu0
    %v460 = vadd.f32 %v92, %v459
    %v461 = vpop.f32.mrf.mxu0
    %v462 = vadd.f32 %v92, %v461
    %463 = vmatmul.bf16.gmra.mxu0 %v322
    %v464 = vpop.f32.mrf.mxu0
    %v465 = vadd.f32 %v92, %v464
    %v466 = vpop.f32.mrf.mxu0
    %v467 = vadd.f32 %v92, %v466
    %468 = vmatmul.bf16.gmra.mxu0 %v325
    %v469 = vpop.f32.mrf.mxu0
    %v470 = vadd.f32 %v92, %v469
    %v471 = vpop.f32.mrf.mxu0
    %v472 = vadd.f32 %v92, %v471
    %473 = vmatmul.bf16.gmra.mxu0 %v328
    %v474 = vpop.f32.mrf.mxu0
    %v475 = vadd.f32 %v92, %v474
    %v476 = vpop.f32.mrf.mxu0
    %v477 = vadd.f32 %v92, %v476
    %478 = vmatmul.bf16.gmra.mxu0 %v331
    %v479 = vpop.f32.mrf.mxu0
    %v480 = vadd.f32 %v92, %v479
    %v481 = vpop.f32.mrf.mxu0
    %v482 = vadd.f32 %v92, %v481
    %483 = vmatmul.bf16.gmra.mxu0 %v334
    %v484 = vpop.f32.mrf.mxu0
    %v485 = vadd.f32 %v92, %v484
    %v486 = vpop.f32.mrf.mxu0
    %v487 = vadd.f32 %v92, %v486
    %488 = vmatmul.bf16.gmra.mxu0 %v337
    %v489 = vpop.f32.mrf.mxu0
    %v490 = vadd.f32 %v92, %v489
    %v491 = vpop.f32.mrf.mxu0
    %v492 = vadd.f32 %v92, %v491
    %493 = vmatmul.bf16.gmra.mxu0 %v340
    %v494 = vpop.f32.mrf.mxu0
    %v495 = vadd.f32 %v92, %v494
    %v496 = vpop.f32.mrf.mxu0
    %v497 = vadd.f32 %v92, %v496
    %498 = vmatmul.bf16.gmra.mxu0 %v343
    %v499 = vpop.f32.mrf.mxu0
    %v500 = vadd.f32 %v92, %v499
    %v501 = vpop.f32.mrf.mxu0
    %v502 = vadd.f32 %v92, %v501
    %503 = vmatmul.bf16.gmra.mxu0 %v346
    %v504 = vpop.f32.mrf.mxu0
    %v505 = vadd.f32 %v92, %v504
    %v506 = vpop.f32.mrf.mxu0
    %v507 = vadd.f32 %v92, %v506
    %508 = vmatmul.bf16.gmra.mxu0 %v349
    %v509 = vpop.f32.mrf.mxu0
    %v510 = vadd.f32 %v92, %v509
    %v511 = vpop.f32.mrf.mxu0
    %v512 = vadd.f32 %v92, %v511
    %513 = vmatmul.bf16.gmra.mxu0 %v352
    %v514 = vpop.f32.mrf.mxu0
    %v515 = vadd.f32 %v92, %v514
    %v516 = vpop.f32.mrf.mxu0
    %v517 = vadd.f32 %v92, %v516
    %518 = vmatmul.bf16.gmra.mxu0 %v355
    %v519 = vpop.f32.mrf.mxu0
    %v520 = vadd.f32 %v92, %v519
    %v521 = vpop.f32.mrf.mxu0
    %v522 = vadd.f32 %v92, %v521
    %523 = vmatmul.bf16.gmra.mxu0 %v358
    %v524 = vpop.f32.mrf.mxu0
    %v525 = vadd.f32 %v92, %v524
    %v526 = vpop.f32.mrf.mxu0
    %v527 = vadd.f32 %v92, %v526
    %528 = vmatmul.bf16.gmra.mxu0 %v361
    %v529 = vpop.f32.mrf.mxu0
    %v530 = vadd.f32 %v92, %v529
    %v531 = vpop.f32.mrf.mxu0
    %v532 = vadd.f32 %v92, %v531
    %533 = vmatmul.bf16.gmra.mxu0 %v364
    %v534 = vpop.f32.mrf.mxu0
    %v535 = vadd.f32 %v92, %v534
    %v536 = vpop.f32.mrf.mxu0
    %v537 = vadd.f32 %v92, %v536
    %538 = vdwg.mxu0
    %v539 = vmax.f32 %v380, 0.0
    %v540 = vmax.f32 %v382, 0.0
    %v541 = vmax.f32 %v385, 0.0
    %v542 = vmax.f32 %v387, 0.0
    %v543 = vmax.f32 %v390, 0.0
    %v544 = vmax.f32 %v392, 0.0
    %v545 = vmax.f32 %v395, 0.0
    %v546 = vmax.f32 %v397, 0.0
    %v547 = vmax.f32 %v400, 0.0
    %v548 = vmax.f32 %v402, 0.0
    %v549 = vmax.f32 %v405, 0.0
    %v550 = vmax.f32 %v407, 0.0
    %v551 = vmax.f32 %v410, 0.0
    %v552 = vmax.f32 %v412, 0.0
    %v553 = vmax.f32 %v415, 0.0
    %v554 = vmax.f32 %v417, 0.0
    %v555 = vmax.f32 %v420, 0.0
    %v556 = vmax.f32 %v422, 0.0
    %v557 = vmax.f32 %v425, 0.0
    %v558 = vmax.f32 %v427, 0.0
    %v559 = vmax.f32 %v430, 0.0
    %v560 = vmax.f32 %v432, 0.0
    %v561 = vmax.f32 %v435, 0.0
    %v562 = vmax.f32 %v437, 0.0
    %v563 = vmax.f32 %v440, 0.0
    %v564 = vmax.f32 %v442, 0.0
    %v565 = vmax.f32 %v445, 0.0
    %v566 = vmax.f32 %v447, 0.0
    %v567 = vmax.f32 %v450, 0.0
    %v568 = vmax.f32 %v452, 0.0
    %v569 = vmax.f32 %v455, 0.0
    %v570 = vmax.f32 %v457, 0.0
    %v571 = vmax.f32 %v460, 0.0
    %v572 = vmax.f32 %v462, 0.0
    %v573 = vmax.f32 %v465, 0.0
    %v574 = vmax.f32 %v467, 0.0
    %v575 = vmax.f32 %v470, 0.0
    %v576 = vmax.f32 %v472, 0.0
    %v577 = vmax.f32 %v475, 0.0
    %v578 = vmax.f32 %v477, 0.0
    %v579 = vmax.f32 %v480, 0.0
    %v580 = vmax.f32 %v482, 0.0
    %v581 = vmax.f32 %v485, 0.0
    %v582 = vmax.f32 %v487, 0.0
    %v583 = vmax.f32 %v490, 0.0
    %v584 = vmax.f32 %v492, 0.0
    %v585 = vmax.f32 %v495, 0.0
    %v586 = vmax.f32 %v497, 0.0
    %v587 = vmax.f32 %v500, 0.0
    %v588 = vmax.f32 %v502, 0.0
    %v589 = vmax.f32 %v505, 0.0
    %v590 = vmax.f32 %v507, 0.0
    %v591 = vmax.f32 %v510, 0.0
    %v592 = vmax.f32 %v512, 0.0
    %v593 = vmax.f32 %v515, 0.0
    %v594 = vmax.f32 %v517, 0.0
    %v595 = vmax.f32 %v520, 0.0
    %v596 = vmax.f32 %v522, 0.0
    %v597 = vmax.f32 %v525, 0.0
    %v598 = vmax.f32 %v527, 0.0
    %v599 = vmax.f32 %v530, 0.0
    %v600 = vmax.f32 %v532, 0.0
    %v601 = vmax.f32 %v535, 0.0
    %v602 = vmax.f32 %v537, 0.0
    %v603 = vld [vmem:[#allocation2] sm:$0x3]
    %v604 = vadd.f32 %v539, %v540
    %v605 = vadd.f32 %v604, %v541
    %v606 = vadd.f32 %v605, %v542
    %v607 = vadd.f32 %v606, %v543
    %v608 = vadd.f32 %v607, %v544
    %v609 = vadd.f32 %v608, %v545
    %v610 = vadd.f32 %v609, %v546
    %v611 = vadd.f32 %v610, %v547
    %v612 = vadd.f32 %v611, %v548
    %v613 = vadd.f32 %v612, %v549
    %v614 = vadd.f32 %v613, %v550
    %v615 = vadd.f32 %v614, %v551
    %v616 = vadd.f32 %v615, %v552
    %v617 = vadd.f32 %v616, %v553
    %v618 = vadd.f32 %v617, %v554
    %v619 = vadd.f32 %v618, %v555
    %v620 = vadd.f32 %v619, %v556
    %v621 = vadd.f32 %v620, %v557
    %v622 = vadd.f32 %v621, %v558
    %v623 = vadd.f32 %v622, %v559
    %v624 = vadd.f32 %v623, %v560
    %v625 = vadd.f32 %v624, %v561
    %v626 = vadd.f32 %v625, %v562
    %v627 = vadd.f32 %v626, %v563
    %v628 = vadd.f32 %v627, %v564
    %v629 = vadd.f32 %v628, %v565
    %v630 = vadd.f32 %v629, %v566
    %v631 = vadd.f32 %v630, %v567
    %v632 = vadd.f32 %v631, %v568
    %v633 = vadd.f32 %v632, %v569
    %v634 = vadd.f32 %v633, %v570
    %v635 = vrot.slane %v634, 4
    %v636 = vadd.f32 %v634, %v635
    %v637 = vrot.slane %v636, 2
    %v638 = vadd.f32 %v636, %v637
    %v639 = vrot.slane %v638, 1
    %v640 = vadd.f32 %v638, %v639
    %v641 = vadd.f32 %v571, %v572
    %v642 = vadd.f32 %v641, %v573
    %v643 = vadd.f32 %v642, %v574
    %v644 = vadd.f32 %v643, %v575
    %v645 = vadd.f32 %v644, %v576
    %v646 = vadd.f32 %v645, %v577
    %v647 = vadd.f32 %v646, %v578
    %v648 = vadd.f32 %v647, %v579
    %v649 = vadd.f32 %v648, %v580
    %v650 = vadd.f32 %v649, %v581
    %v651 = vadd.f32 %v650, %v582
    %v652 = vadd.f32 %v651, %v583
    %v653 = vadd.f32 %v652, %v584
    %v654 = vadd.f32 %v653, %v585
    %v655 = vadd.f32 %v654, %v586
    %v656 = vadd.f32 %v655, %v587
    %v657 = vadd.f32 %v656, %v588
    %v658 = vadd.f32 %v657, %v589
    %v659 = vadd.f32 %v658, %v590
    %v660 = vadd.f32 %v659, %v591
    %v661 = vadd.f32 %v660, %v592
    %v662 = vadd.f32 %v661, %v593
    %v663 = vadd.f32 %v662, %v594
    %v664 = vadd.f32 %v663, %v595
    %v665 = vadd.f32 %v664, %v596
    %v666 = vadd.f32 %v665, %v597
    %v667 = vadd.f32 %v666, %v598
    %v668 = vadd.f32 %v667, %v599
    %v669 = vadd.f32 %v668, %v600
    %v670 = vadd.f32 %v669, %v601
    %v671 = vadd.f32 %v670, %v602
    %v672 = vrot.slane %v671, 4
    %v673 = vadd.f32 %v671, %v672
    %v674 = vrot.slane %v673, 2
    %v675 = vadd.f32 %v673, %v674
    %v676 = vrot.slane %v675, 1
    %v677 = vadd.f32 %v675, %v676
    %vm680 = vcmask 1041409
    %v681 = vsel %vm680, %v677, %v640
    %v683 = vadd.f32 %v603, %v681
    %684 = vst [vmem:[#allocation2] sm:$0x3] %v683
    // Predicated region
    $region18: #{tpu_custom_call.1} parent=1 // pred_check
      _
    $region19: #{tpu_custom_call.1} parent=1 // pred_check_branch
      %686 = sbr.rel (0) target = $region21
    $region20: #{tpu_custom_call.1} parent=1 // pred_region
      %688 = vsyncadd [#allocation3], 0
      %s690 = sshll.u32 [#allocation2], 4
      %s691 = int_to_ptr.vmem [resolvable:$true] %s690
      %s692 = sshll.u32 %s3, 4
      %s693 = int_to_ptr.hbm [resolvable:$true] %s692
      %695 = dma.vmem_to_hbm [thread:$0]  %s691, 32, %s693, [#allocation3]
    $region21: #{tpu_custom_call.1} parent=1 // pred_fallthru
      _
    // Predicated region
    $region22: #{tpu_custom_call.1} parent=1 // pred_check
      _
    $region23: #{tpu_custom_call.1} parent=1 // pred_check_branch
      %697 = sbr.rel (0) target = $region25
    $region24: #{tpu_custom_call.1} parent=1 // pred_region
      %699 = dma.done [#allocation3], 32
    $region25: #{tpu_custom_call.1} parent=1 // pred_fallthru
      _
    %700 = vsyncpa [#allocation3], 1

</llo_original>
